<compile_context>
chip_gen: v5e
topology: v5e:2x2
jax: 0.10.0
libtpu: 0.0.40
codegen_flags: <defaults>
</compile_context>

<pallas_src>
import functools

import jax
import jax.numpy as jnp
from jax.experimental import pallas as pl
from jax.experimental.pallas import tpu as pltpu


def _contrastive_kernel(q_ref, k_ref, loss_ref, *, inv_temp, tile_n, stabilize):
    # q_ref block:    (1, C, TILE_N)  -- this tile's query patches (channel-major)
    # k_ref block:    (1, C, N)       -- all key patches of this batch element
    # loss_ref block: (1, 1, TILE_N)  -- per-patch CE loss, lane-dense
    jt = pl.program_id(1)

    qb = q_ref[0].astype(jnp.float32)          # (C, TILE_N)
    kb = k_ref[0].astype(jnp.float32)          # (C, N)

    eps = jnp.float32(1e-12)
    inv_t = jnp.float32(inv_temp)

    # F.normalize(x, p=1, dim=channel): x / clamp_min(||x||_1, eps); fold 1/T into q.
    q_l1 = jnp.maximum(jnp.sum(jnp.abs(qb), axis=0, keepdims=True), eps)   # (1, TILE_N)
    qs = (qb / q_l1) * inv_t                                               # (C, TILE_N)
    k_l1 = jnp.maximum(jnp.sum(jnp.abs(kb), axis=0, keepdims=True), eps)   # (1, N)
    kn = kb / k_l1                                                         # (C, N)

    # Positive logit: elementwise <q_i, k_i> over C for this tile's own k columns
    # (replaces the iota/diag extraction on the (N, N) matrix).
    start = pl.multiple_of(jt * tile_n, tile_n)
    kt = k_ref[0, :, pl.ds(start, tile_n)].astype(jnp.float32)             # (C, TILE_N)
    kt_l1 = jnp.maximum(jnp.sum(jnp.abs(kt), axis=0, keepdims=True), eps)
    ktn = kt / kt_l1
    pos = jnp.sum(qs * ktn, axis=0, keepdims=True)                         # (1, TILE_N), already /T

    # Similarity logits on the MXU: s[j, i] = <k_j, q_i> / T  -> shape (N, TILE_N).
    # bf16 operands, f32 accumulation.
    s = jax.lax.dot_general(
        kn.astype(jnp.bfloat16), qs.astype(jnp.bfloat16),
        (((0,), (0,)), ((), ())),
        preferred_element_type=jnp.float32)

    if stabilize:
        m = jnp.max(s, axis=0, keepdims=True)
        lse = m + jnp.log(jnp.sum(jnp.exp(s - m), axis=0, keepdims=True))  # (1, TILE_N)
    else:
        # |s| <= 1/T because both operands are L1-normalized: exp cannot overflow in f32.
        lse = jnp.log(jnp.sum(jnp.exp(s), axis=0, keepdims=True))          # (1, TILE_N)

    # Per-patch cross-entropy against class 0 (the positive), lane-dense store.
    loss_ref[0] = lse - pos                                                # (1, TILE_N)


def _pick_tile_n(n):
    for t in (512, 256, 128):
        if n % t == 0:
            return t
    return n  # fallback: single full-width tile


def contrastive_loss_sup(feat_q, feat_k, temperature=0.07, base_temperature=0.07):
    # base_temperature is unused in the PyTorch forward as well.
    assert feat_q.shape == feat_k.shape, (feat_q.shape, feat_k.shape)
    B, C = feat_q.shape[0], feat_q.shape[1]

    # Channel-major (B, C, N): pure reshape of NCHW, no HBM transpose.
    q = feat_q.reshape(B, C, -1)
    k = feat_k.reshape(B, C, -1)
    N = q.shape[2]

    tile_n = _pick_tile_n(N)
    gn = N // tile_n
    inv_temp = 1.0 / float(temperature)

    kernel = functools.partial(
        _contrastive_kernel,
        inv_temp=inv_temp,
        tile_n=tile_n,
        stabilize=(inv_temp > 60.0),  # |logits| <= 1/T; only stabilize if that could overflow
    )

    per_patch = pl.pallas_call(
        kernel,
        out_shape=jax.ShapeDtypeStruct((B, gn, tile_n), jnp.float32),
        grid_spec=pltpu.PrefetchScalarGridSpec(
            num_scalar_prefetch=0,
            grid=(B, gn),
            in_specs=[
                pl.BlockSpec((1, C, tile_n), lambda b, j: (b, 0, j)),
                pl.BlockSpec((1, C, N), lambda b, j: (b, 0, 0)),
            ],
            out_specs=pl.BlockSpec((1, 1, tile_n), lambda b, j: (b, j, 0)),
        ),
        compiler_params=pltpu.CompilerParams(
            dimension_semantics=("parallel", "parallel"),
            vmem_limit_bytes=64 * 1024 * 1024,
        ),
    )(q, k)

    # CrossEntropyLoss default reduction='mean' over the B*N rows.
    return jnp.mean(per_patch)


def _reference(feat_q, feat_k, temperature):
    """Pure-JAX re-implementation of the PyTorch forward, for a sanity check."""
    B, C = feat_q.shape[0], feat_q.shape[1]
    q = feat_q.reshape(B, C, -1).transpose(0, 2, 1)
    k = feat_k.reshape(B, C, -1).transpose(0, 2, 1)
    q = q / jnp.maximum(jnp.sum(jnp.abs(q), -1, keepdims=True), 1e-12)
    k = k / jnp.maximum(jnp.sum(jnp.abs(k), -1, keepdims=True), 1e-12)
    N = q.shape[1]
    l_pos = jnp.einsum('bnd,bnd->bn', q, k).reshape(-1, 1)
    l_neg = jnp.einsum('bnd,bmd->bnm', q, k)
    l_neg = jnp.where(jnp.eye(N, dtype=bool)[None], -jnp.inf, l_neg).reshape(-1, N)
    out = jnp.concatenate([l_pos, l_neg], axis=1) / temperature
    lse = jax.nn.logsumexp(out, axis=1)
    return jnp.mean(lse - out[:, 0])


if __name__ == "__main__":
    key = jax.random.PRNGKey(0)
    kq, kk = jax.random.split(key)

    # small NCHW shapes: batch=2, channels=32, spatial=16x16 -> N=256 patches
    B, C, H, W = 2, 32, 16, 16
    feat_q = jax.random.normal(kq, (B, C, H, W), dtype=jnp.float32)
    feat_k = jax.random.normal(kk, (B, C, H, W), dtype=jnp.float32)

    loss = jax.block_until_ready(contrastive_loss_sup(feat_q, feat_k))
    ref = jax.block_until_ready(_reference(feat_q, feat_k, 0.07))
    assert jnp.allclose(loss, ref, rtol=1e-3, atol=1e-2), (float(loss), float(ref))

    print("KERNEL_OK")
</pallas_src>

<mosaic_0001>
module attributes {stable_mosaic.version = 11 : i64} {
  func.func @_contrastive_kernel(%arg0: i32, %arg1: i32, %arg2: memref<1x32x256xf32, #tpu.memory_space<vmem>>, %arg3: memref<1x32x256xf32, #tpu.memory_space<vmem>>, %arg4: memref<1x1x256xf32, #tpu.memory_space<vmem>>) attributes {dimension_semantics = [#tpu.dimension_semantics<parallel>, #tpu.dimension_semantics<parallel>], iteration_bounds = array<i64: 2, 1>, scalar_prefetch = 0 : i64, scratch_operands = 0 : i64, tpu.core_type = #tpu.core_type<tc>, window_params = [{transform_indices = @transform_0, window_bounds = array<i64: 1, 32, 256>}, {transform_indices = @transform_1, window_bounds = array<i64: 1, 32, 256>}, {transform_indices = @transform_2, window_bounds = array<i64: 1, 1, 256>}]} {
    %c0 = arith.constant 0 : index
    %c0_0 = arith.constant 0 : index
    %c0_1 = arith.constant 0 : index
    %0 = vector.load %arg2[%c0, %c0_0, %c0_1] : memref<1x32x256xf32, #tpu.memory_space<vmem>>, vector<1x32x256xf32>
    %1 = vector.shape_cast %0 : vector<1x32x256xf32> to vector<32x256xf32>
    %c0_2 = arith.constant 0 : index
    %c0_3 = arith.constant 0 : index
    %c0_4 = arith.constant 0 : index
    %2 = vector.load %arg3[%c0_2, %c0_3, %c0_4] : memref<1x32x256xf32, #tpu.memory_space<vmem>>, vector<1x32x256xf32>
    %3 = vector.shape_cast %2 : vector<1x32x256xf32> to vector<32x256xf32>
    %4 = math.absf %1 : vector<32x256xf32>
    %cst = arith.constant dense<0.000000e+00> : vector<256xf32>
    %5 = vector.multi_reduction <add>, %4, %cst [0] : vector<32x256xf32> to vector<256xf32>
    %6 = vector.shape_cast %5 : vector<256xf32> to vector<1x256xf32>
    %cst_5 = arith.constant 9.99999996E-13 : f32
    %7 = vector.broadcast %cst_5 : f32 to vector<1x256xf32>
    %8 = arith.maximumf %6, %7 : vector<1x256xf32>
    %9 = vector.broadcast %8 : vector<1x256xf32> to vector<32x256xf32>
    %10 = arith.divf %1, %9 : vector<32x256xf32>
    %cst_6 = arith.constant 14.2857141 : f32
    %11 = vector.broadcast %cst_6 : f32 to vector<32x256xf32>
    %12 = arith.mulf %10, %11 : vector<32x256xf32>
    %13 = math.absf %3 : vector<32x256xf32>
    %cst_7 = arith.constant dense<0.000000e+00> : vector<256xf32>
    %14 = vector.multi_reduction <add>, %13, %cst_7 [0] : vector<32x256xf32> to vector<256xf32>
    %15 = vector.shape_cast %14 : vector<256xf32> to vector<1x256xf32>
    %cst_8 = arith.constant 9.99999996E-13 : f32
    %16 = vector.broadcast %cst_8 : f32 to vector<1x256xf32>
    %17 = arith.maximumf %15, %16 : vector<1x256xf32>
    %18 = vector.broadcast %17 : vector<1x256xf32> to vector<32x256xf32>
    %19 = arith.divf %3, %18 : vector<32x256xf32>
    %c256_i32 = arith.constant 256 : i32
    %20 = arith.muli %arg1, %c256_i32 : i32
    %21 = tpu.assume_multiple %20, 256 : i32
    %c0_9 = arith.constant 0 : index
    %c0_10 = arith.constant 0 : index
    %22 = arith.index_cast %21 : i32 to index
    %23 = vector.load %arg3[%c0_9, %c0_10, %22] : memref<1x32x256xf32, #tpu.memory_space<vmem>>, vector<1x32x256xf32>
    %24 = vector.shape_cast %23 : vector<1x32x256xf32> to vector<32x256xf32>
    %25 = math.absf %24 : vector<32x256xf32>
    %cst_11 = arith.constant dense<0.000000e+00> : vector<256xf32>
    %26 = vector.multi_reduction <add>, %25, %cst_11 [0] : vector<32x256xf32> to vector<256xf32>
    %27 = vector.shape_cast %26 : vector<256xf32> to vector<1x256xf32>
    %cst_12 = arith.constant 9.99999996E-13 : f32
    %28 = vector.broadcast %cst_12 : f32 to vector<1x256xf32>
    %29 = arith.maximumf %27, %28 : vector<1x256xf32>
    %30 = vector.broadcast %29 : vector<1x256xf32> to vector<32x256xf32>
    %31 = arith.divf %24, %30 : vector<32x256xf32>
    %32 = arith.mulf %12, %31 : vector<32x256xf32>
    %cst_13 = arith.constant dense<0.000000e+00> : vector<256xf32>
    %33 = vector.multi_reduction <add>, %32, %cst_13 [0] : vector<32x256xf32> to vector<256xf32>
    %34 = vector.shape_cast %33 : vector<256xf32> to vector<1x256xf32>
    %35 = arith.truncf %19 : vector<32x256xf32> to vector<32x256xbf16>
    %36 = arith.truncf %12 : vector<32x256xf32> to vector<32x256xbf16>
    %cst_14 = arith.constant dense<0.000000e+00> : vector<256x256xf32>
    %37 = tpu.matmul %35, %36, %cst_14 {dimension_numbers = #tpu.dot_dimension_numbers<[0], [0], [1], [1], [0, 1, 1, 1], [], []>} : vector<32x256xbf16>, vector<32x256xbf16>, vector<256x256xf32> -> vector<256x256xf32>
    %38 = math.exp %37 : vector<256x256xf32>
    %cst_15 = arith.constant dense<0.000000e+00> : vector<256xf32>
    %39 = vector.multi_reduction <add>, %38, %cst_15 [0] : vector<256x256xf32> to vector<256xf32>
    %40 = vector.shape_cast %39 : vector<256xf32> to vector<1x256xf32>
    %41 = math.log %40 : vector<1x256xf32>
    %42 = arith.subf %41, %34 : vector<1x256xf32>
    %c0_16 = arith.constant 0 : index
    %c0_17 = arith.constant 0 : index
    %c0_18 = arith.constant 0 : index
    %43 = vector.load %arg4[%c0_16, %c0_17, %c0_18] : memref<1x1x256xf32, #tpu.memory_space<vmem>>, vector<1x1x256xf32>
    %44 = vector.shape_cast %43 : vector<1x1x256xf32> to vector<1x256xf32>
    %45 = vector.shape_cast %42 : vector<1x256xf32> to vector<1x1x256xf32>
    tpu.vector_store %arg4[%c0_16, %c0_17, %c0_18], %45 {strides = array<i32>} : memref<1x1x256xf32, #tpu.memory_space<vmem>>, vector<1x1x256xf32>,
    return
  }
  func.func @transform_0(%arg0: i32, %arg1: i32) -> (i32, i32, i32) {
    %c0_i32 = arith.constant 0 : i32
    %c0_i32_0 = arith.constant 0 : i32
    return %arg0, %c0_i32, %arg1 : i32, i32, i32
  }
  func.func @transform_1(%arg0: i32, %arg1: i32) -> (i32, i32, i32) {
    %c0_i32 = arith.constant 0 : i32
    %c0_i32_0 = arith.constant 0 : i32
    %c0_i32_1 = arith.constant 0 : i32
    return %arg0, %c0_i32, %c0_i32_0 : i32, i32, i32
  }
  func.func @transform_2(%arg0: i32, %arg1: i32) -> (i32, i32, i32) {
    %c0_i32 = arith.constant 0 : i32
    %c0_i32_0 = arith.constant 0 : i32
    return %arg0, %arg1, %c0_i32 : i32, i32, i32
  }
}

</mosaic_0001>

<llo_original>
// kernel: tpu_custom_call.1
$region0: #{tpu_custom_call.1}
  #allocation0 [shape = 'u32[]', space=smem, size = 0x4, offset = 0x4, fixed_abs, tag = 'smem constant byte address 0x4 - core index']
  #allocation1 [shape = 'u32[72,128]{1,0:T(1,128)}', space=vmem, size = 0x9000, scoped, tag = 'internal scratch']
  %s0 = inlined_call_operand.hbm [shape: f32[2,32,256], index: 0, kind: input, shape index: {}]
  %s1 = inlined_call_operand.hbm [shape: f32[2,32,256], index: 1, kind: input, shape index: {}]
  %s2 = inlined_call_operand.hbm [shape: f32[2,1,256], index: 2, kind: output, shape index: {}]
  %s3 = sld [smem:[#allocation0]]
  $region49: #{tpu_custom_call.1} parent=0
    _
  %s5 = ssub.s32 1, %s3
  %s6 = scalar_select 0, %s5, %s3
  $region1: #{tpu_custom_call.1} parent=0
    #allocation2 [shape = 'u8[65536]{0}', space=vmem, size = 0x10000, scoped, tag = 'input window, operand 0']
    #allocation3 [shape = 's32[2]{0}', space=sflag, size = 0x8, scoped, tag = 'scoped memory for tpu_custom_call.1']
    #allocation4 [shape = 's32[2]{0}', space=sflag, size = 0x8, scoped, tag = 'scoped memory for tpu_custom_call.1']
    #allocation5 [shape = 'u8[65536]{0}', space=vmem, size = 0x10000, scoped, tag = 'input window, operand 1']
    #allocation6 [shape = 's32[2]{0}', space=sflag, size = 0x8, scoped, tag = 'scoped memory for tpu_custom_call.1']
    #allocation7 [shape = 'u8[2048]{0}', space=vmem, size = 0x800, scoped, tag = 'output window, operand 0']
    %7 = vsyncpa [#allocation3], 0
    %s8 = scalar_lea.sflag [#allocation3], 1
    %9 = vsyncpa %s8, 0
    %10 = vsyncpa [#allocation6], 0
    %s11 = scalar_lea.sflag [#allocation6], 1
    %12 = vsyncpa %s11, 0
    %13 = vsyncpa [#allocation4], 0
    %s14 = scalar_lea.sflag [#allocation4], 1
    %15 = vsyncpa %s14, 0
    loop: start=0, step=1, limit=4
    $region2: #{tpu_custom_call.1} parent=1 // loop_pre_header
      _
    $region3: #{tpu_custom_call.1} parent=1 // loop_header
      %s17 = sphi 0, %s21
      %p18 = scmp.ge.s32.totalorder %s17, 4
      %s24 = sphi 0, %s36
      %s25 = sphi 0, %s32
      %s26 = sphi 0, %s24
      %s27 = sphi 0, %s25
      %s28 = sphi 0, %s26
      %s29 = sphi 0, %s27
      %s41 = sphi 0, %s43
      %s44 = sphi 0, %s41
      %s45 = sphi 0, %s44
      %s61 = sphi 0, %s45
      %s67 = sphi 0, %s69
      %s70 = sphi 0, %s67
      %s71 = sphi 0, %s70
      %s87 = sphi 0, %s71
      %s95 = sphi 0, %s97
      %s98 = sphi 0, %s95
      %s99 = sphi 0, %s98
      %s115 = sphi 0, %s99
    $region4: #{tpu_custom_call.1} parent=1 // loop_header_branch
      %20 = sbr.rel (%p18) target = $region8
    $region5: #{tpu_custom_call.1} parent=1 // loop_body
      %s22 = ssub.s32 %s17, 1
      %s23 = ssub.s32 %s17, 2
      %s30 = sadd.s32 1, %s25
      %p31 = scmp.ge.s32.totalorder %s30, 1
      %s32 = scalar_select %p31, 0, %s30
      %s33 = sadd.s32 1, %s24
      %s34 = scalar_select %p31, %s33, %s24
      %p35 = scmp.ge.s32.totalorder %s34, 2
      %s36 = scalar_select %p35, 0, %s34
      %s37 = ssub.s32 %s24, %s36
      %s38 = ssub.s32 %s25, %s32
      %s39 = sor.u32 %s37, %s38
      %p40 = scmp.eq.s32.totalorder %s39, 0
      %s42 = sadd.s32 %s41, 1
      %s43 = scalar_select %p40, %s41, %s42
      %p46 = pneg %p40
      %p47 = scmp.eq.s32.totalorder %s17, 1
      %p48 = por %p46, %p47
      %p49 = scmp.ne.s32.totalorder %s41, %s44
      %p50 = scmp.eq.s32.totalorder %s17, 0
      %p51 = por %p49, %p50
      %p52 = scmp.ne.s32.totalorder %s41, %s44
      %p53 = scmp.eq.s32.totalorder %s22, 1
      %p54 = por %p52, %p53
      %p55 = scmp.ne.s32.totalorder %s44, %s45
      %p56 = scmp.eq.s32.totalorder %s22, 0
      %p57 = por %p55, %p56
      %p58 = scmp.ne.s32.totalorder %s44, %s45
      %p59 = scmp.eq.s32.totalorder %s23, 1
      %p60 = por %p58, %p59
      %p62 = scmp.ne.s32.totalorder %s45, %s61
      %p63 = scmp.eq.s32.totalorder %s23, 0
      %p64 = por %p62, %p63
      %s65 = ssub.s32 %s24, %s36
      %p66 = scmp.eq.s32.totalorder %s65, 0
      %s68 = sadd.s32 %s67, 1
      %s69 = scalar_select %p66, %s67, %s68
      %p72 = pneg %p66
      %p73 = scmp.eq.s32.totalorder %s17, 1
      %p74 = por %p72, %p73
      %p75 = scmp.ne.s32.totalorder %s67, %s70
      %p76 = scmp.eq.s32.totalorder %s17, 0
      %p77 = por %p75, %p76
      %p78 = scmp.ne.s32.totalorder %s67, %s70
      %p79 = scmp.eq.s32.totalorder %s22, 1
      %p80 = por %p78, %p79
      %p81 = scmp.ne.s32.totalorder %s70, %s71
      %p82 = scmp.eq.s32.totalorder %s22, 0
      %p83 = por %p81, %p82
      %p84 = scmp.ne.s32.totalorder %s70, %s71
      %p85 = scmp.eq.s32.totalorder %s23, 1
      %p86 = por %p84, %p85
      %p88 = scmp.ne.s32.totalorder %s71, %s87
      %p89 = scmp.eq.s32.totalorder %s23, 0
      %p90 = por %p88, %p89
      %s91 = ssub.s32 %s24, %s36
      %s92 = ssub.s32 %s25, %s32
      %s93 = sor.u32 %s91, %s92
      %p94 = scmp.eq.s32.totalorder %s93, 0
      %s96 = sadd.s32 %s95, 1
      %s97 = scalar_select %p94, %s95, %s96
      %p100 = pneg %p94
      %p101 = scmp.eq.s32.totalorder %s17, 1
      %p102 = por %p100, %p101
      %p103 = scmp.ne.s32.totalorder %s95, %s98
      %p104 = scmp.eq.s32.totalorder %s17, 0
      %p105 = por %p103, %p104
      %p106 = scmp.ne.s32.totalorder %s95, %s98
      %p107 = scmp.eq.s32.totalorder %s22, 1
      %p108 = por %p106, %p107
      %p109 = scmp.ne.s32.totalorder %s98, %s99
      %p110 = scmp.eq.s32.totalorder %s22, 0
      %p111 = por %p109, %p110
      %p112 = scmp.ne.s32.totalorder %s98, %s99
      %p113 = scmp.eq.s32.totalorder %s23, 1
      %p114 = por %p112, %p113
      %p116 = scmp.ne.s32.totalorder %s99, %s115
      %p117 = scmp.eq.s32.totalorder %s23, 0
      %p118 = por %p116, %p117
      %p119 = scmp.le.s32.totalorder 1, %s17
      %p120 = scmp.lt.s32.totalorder %s17, 3
      %p121 = pnand %p119, %p120
      %p122 = pneg %p121
      // Predicated region
      $region9: #{tpu_custom_call.1} parent=5 // pred_check
        _
      $region10: #{tpu_custom_call.1} parent=5 // pred_check_branch
        %124 = sbr.rel (%p121) target = $region12
      $region11: #{tpu_custom_call.1} parent=5 // pred_region
        %s125 = ssub.s32 %s17, 1
      $region12: #{tpu_custom_call.1} parent=5 // pred_fallthru
        _
      %p126 = scmp.lt.s32.totalorder %s17, 2
      // Predicated region
      $region13: #{tpu_custom_call.1} parent=5 // pred_check
        %p127 = pneg %p126
      $region14: #{tpu_custom_call.1} parent=5 // pred_check_branch
        %129 = sbr.rel (%p127) target = $region16
      $region15: #{tpu_custom_call.1} parent=5 // pred_region
        // Predicated region
        $region17: #{tpu_custom_call.1} parent=15 // pred_check
          %p130 = pneg %p51
        $region18: #{tpu_custom_call.1} parent=15 // pred_check_branch
          %132 = sbr.rel (%p130) target = $region20
        $region19: #{tpu_custom_call.1} parent=15 // pred_region
          %s133 = sand.u32 %s41, 1
          %s134 = scalar_lea.sflag [#allocation3], %s133
          %s135 = sand.u32 %s41, 1
          %s136 = smul.addr %s135, 64
          %s137 = scalar_lea.vmem [#allocation2], %s136
          %s138 = smul.u32 2, %s25
          %140 = vsyncadd %s134, 0
          %s141 = smul.addr %s24, 8
          %s142 = sadd.s32 %s138, %s141
          %s143 = smul.addr %s142, 8
          %s144 = scalar_lea.hbm %s0, %s143
          %s145 = sshll.u32 %s144, 4
          %s146 = int_to_ptr.hbm [resolvable:$true] %s145
          %s147 = sshll.u32 %s137, 4
          %s148 = int_to_ptr.vmem [resolvable:$true] %s147
          %153 = dma.hbm_to_vmem [thread:$0]  %s146, 1024, %s148, %s134, 256, 256, 16
        $region20: #{tpu_custom_call.1} parent=15 // pred_fallthru
          _
        // Predicated region
        $region21: #{tpu_custom_call.1} parent=15 // pred_check
          %p154 = pneg %p77
        $region22: #{tpu_custom_call.1} parent=15 // pred_check_branch
          %156 = sbr.rel (%p154) target = $region24
        $region23: #{tpu_custom_call.1} parent=15 // pred_region
          %s157 = sand.u32 %s67, 1
          %s158 = scalar_lea.sflag [#allocation6], %s157
          %s159 = sand.u32 %s67, 1
          %s160 = smul.addr %s159, 64
          %s161 = scalar_lea.vmem [#allocation5], %s160
          %163 = vsyncadd %s158, 0
          %s164 = smul.addr %s24, 8
          %s165 = smul.addr %s164, 8
          %s166 = scalar_lea.hbm %s1, %s165
          %s167 = sshll.u32 %s166, 4
          %s168 = int_to_ptr.hbm [resolvable:$true] %s167
          %s169 = sshll.u32 %s161, 4
          %s170 = int_to_ptr.vmem [resolvable:$true] %s169
          %175 = dma.hbm_to_vmem [thread:$0]  %s168, 1024, %s170, %s158, 256, 256, 16
        $region24: #{tpu_custom_call.1} parent=15 // pred_fallthru
          _
      $region16: #{tpu_custom_call.1} parent=5 // pred_fallthru
        _
      %p176 = scmp.le.s32.totalorder 1, %s17
      %p177 = scmp.lt.s32.totalorder %s17, 3
      %p178 = pnand %p176, %p177
      %p179 = pneg %p178
      // Predicated region
      $region25: #{tpu_custom_call.1} parent=5 // pred_check
        _
      $region26: #{tpu_custom_call.1} parent=5 // pred_check_branch
        %181 = sbr.rel (%p178) target = $region28
      $region27: #{tpu_custom_call.1} parent=5 // pred_region
        %s182 = ssub.s32 %s17, 1
        %s183 = sand.u32 %s44, 1
        %s184 = scalar_lea.sflag [#allocation3], %s183
        %s185 = sand.u32 %s44, 1
        %s186 = smul.addr %s185, 64
        %s187 = scalar_lea.vmem [#allocation2], %s186
        // Predicated region
        $region29: #{tpu_custom_call.1} parent=27 // pred_check
          %p188 = pneg %p57
        $region30: #{tpu_custom_call.1} parent=27 // pred_check_branch
          %190 = sbr.rel (%p188) target = $region32
        $region31: #{tpu_custom_call.1} parent=27 // pred_region
          %192 = dma.done %s184, 1024
        $region32: #{tpu_custom_call.1} parent=27 // pred_fallthru
          _
        %s193 = sand.u32 %s70, 1
        %s194 = scalar_lea.sflag [#allocation6], %s193
        %s195 = sand.u32 %s70, 1
        %s196 = smul.addr %s195, 64
        %s197 = scalar_lea.vmem [#allocation5], %s196
        // Predicated region
        $region33: #{tpu_custom_call.1} parent=27 // pred_check
          %p198 = pneg %p83
        $region34: #{tpu_custom_call.1} parent=27 // pred_check_branch
          %200 = sbr.rel (%p198) target = $region36
        $region35: #{tpu_custom_call.1} parent=27 // pred_region
          %202 = dma.done %s194, 1024
        $region36: #{tpu_custom_call.1} parent=27 // pred_fallthru
          _
        %s203 = sand.u32 %s44, 1
        %s204 = scalar_lea.sflag [#allocation3], %s203
        %s205 = sand.u32 %s44, 1
        %s206 = smul.addr %s205, 64
        %s207 = scalar_lea.vmem [#allocation2], %s206
        %p208 = pneg %p57
        %p209 = pneg %p54
        %s210 = sand.u32 %s70, 1
        %s211 = scalar_lea.sflag [#allocation6], %s210
        %s212 = sand.u32 %s70, 1
        %s213 = smul.addr %s212, 64
        %s214 = scalar_lea.vmem [#allocation5], %s213
        %p215 = pneg %p83
        %p216 = pneg %p80
        %p217 = pneg %p111
        %p218 = pneg %p108
        %s219 = sand.u32 %s98, 1
        %s220 = scalar_lea.sflag [#allocation4], %s219
        %s221 = sand.u32 %s98, 1
        %s222 = smul.addr %s221, 2
        %s223 = scalar_lea.vmem [#allocation7], %s222
        %s224 = smul.u32 2, %s27
        %v226 = vld [vmem:[%s187] sm:$0xff]
        %v227 = vld [vmem:[%s187 + $0x8] sm:$0xff]
        %v228 = vld [vmem:[%s187 + $0x10] sm:$0xff]
        %v229 = vld [vmem:[%s187 + $0x18] sm:$0xff]
        %v230 = vld [vmem:[%s187 + $0x20] sm:$0xff]
        %v231 = vld [vmem:[%s187 + $0x28] sm:$0xff]
        %v232 = vld [vmem:[%s187 + $0x30] sm:$0xff]
        %v233 = vld [vmem:[%s187 + $0x38] sm:$0xff]
        %v234 = vld [vmem:[%s197] sm:$0xff]
        %v235 = vld [vmem:[%s197 + $0x8] sm:$0xff]
        %v236 = vld [vmem:[%s197 + $0x10] sm:$0xff]
        %v237 = vld [vmem:[%s197 + $0x18] sm:$0xff]
        %v238 = vld [vmem:[%s197 + $0x20] sm:$0xff]
        %v239 = vld [vmem:[%s197 + $0x28] sm:$0xff]
        %v240 = vld [vmem:[%s197 + $0x30] sm:$0xff]
        %v241 = vld [vmem:[%s197 + $0x38] sm:$0xff]
        %v242 = vand.u32 2147483647, %v226
        %v243 = vand.u32 2147483647, %v227
        %v244 = vand.u32 2147483647, %v228
        %v245 = vand.u32 2147483647, %v229
        %v246 = vand.u32 2147483647, %v230
        %v247 = vand.u32 2147483647, %v231
        %v248 = vand.u32 2147483647, %v232
        %v249 = vand.u32 2147483647, %v233
        %v250 = vadd.f32 %v242, %v244
        %v251 = vadd.f32 %v250, %v246
        %v252 = vadd.f32 %v251, %v248
        %v253 = vrot.slane %v252, 4
        %v254 = vadd.f32 %v252, %v253
        %v255 = vrot.slane %v254, 2
        %v256 = vadd.f32 %v254, %v255
        %v257 = vrot.slane %v256, 1
        %v258 = vadd.f32 %v256, %v257
        %v259 = vadd.f32 %v243, %v245
        %v260 = vadd.f32 %v259, %v247
        %v261 = vadd.f32 %v260, %v249
        %v262 = vrot.slane %v261, 4
        %v263 = vadd.f32 %v261, %v262
        %v264 = vrot.slane %v263, 2
        %v265 = vadd.f32 %v263, %v264
        %v266 = vrot.slane %v265, 1
        %v267 = vadd.f32 %v265, %v266
        %v268 = vmax.f32 %v258, 1e-12
        %v269 = vmax.f32 %v267, 1e-12
        %v270 = vrcp.pop %v268
        %v271 = vmul.f32 %v268, %v270
        %v272 = vsub.f32 1.0, %v271
        %v273 = vmul.f32 %v270, %v272
        %v274 = vadd.f32 %v270, %v273
        %vm275 = vweird.f32 %v268
        %vm276 = vweird.f32 %v270
        %vm277 = vmor %vm275, %vm276
        %v278 = vsel %vm277, %v270, %v274
        %v279 = vand.u32 2147483647, %v268
        %vm280 = vcmp.eq.f32.partialorder %v279, 8.507059e+37
        %v281 = vand.u32 %v268, 2147483648
        %v282 = vor.u32 1.1754944e-38, %v281
        %v283 = vsel %vm280, %v282, %v278
        %v284 = vmul.f32 %v226, %v283
        %v285 = vrcp.pop %v269
        %v286 = vmul.f32 %v269, %v285
        %v287 = vsub.f32 1.0, %v286
        %v288 = vmul.f32 %v285, %v287
        %v289 = vadd.f32 %v285, %v288
        %vm290 = vweird.f32 %v269
        %vm291 = vweird.f32 %v285
        %vm292 = vmor %vm290, %vm291
        %v293 = vsel %vm292, %v285, %v289
        %v294 = vand.u32 2147483647, %v269
        %vm295 = vcmp.eq.f32.partialorder %v294, 8.507059e+37
        %v296 = vand.u32 %v269, 2147483648
        %v297 = vor.u32 1.1754944e-38, %v296
        %v298 = vsel %vm295, %v297, %v293
        %v299 = vmul.f32 %v227, %v298
        %v300 = vmul.f32 %v228, %v283
        %v301 = vmul.f32 %v229, %v298
        %v302 = vmul.f32 %v230, %v283
        %v303 = vmul.f32 %v231, %v298
        %v304 = vmul.f32 %v232, %v283
        %v305 = vmul.f32 %v233, %v298
        %v306 = vmul.f32 %v284, 14.285714
        %v307 = vmul.f32 %v299, 14.285714
        %v308 = vmul.f32 %v300, 14.285714
        %v309 = vmul.f32 %v301, 14.285714
        %v310 = vmul.f32 %v302, 14.285714
        %v311 = vmul.f32 %v303, 14.285714
        %v312 = vmul.f32 %v304, 14.285714
        %v313 = vmul.f32 %v305, 14.285714
        %v314 = vand.u32 2147483647, %v234
        %v315 = vand.u32 2147483647, %v235
        %v316 = vand.u32 2147483647, %v236
        %v317 = vand.u32 2147483647, %v237
        %v318 = vand.u32 2147483647, %v238
        %v319 = vand.u32 2147483647, %v239
        %v320 = vand.u32 2147483647, %v240
        %v321 = vand.u32 2147483647, %v241
        %v322 = vadd.f32 %v314, %v316
        %v323 = vadd.f32 %v322, %v318
        %v324 = vadd.f32 %v323, %v320
        %v325 = vrot.slane %v324, 4
        %v326 = vadd.f32 %v324, %v325
        %v327 = vrot.slane %v326, 2
        %v328 = vadd.f32 %v326, %v327
        %v329 = vrot.slane %v328, 1
        %v330 = vadd.f32 %v328, %v329
        %v331 = vadd.f32 %v315, %v317
        %v332 = vadd.f32 %v331, %v319
        %v333 = vadd.f32 %v332, %v321
        %v334 = vrot.slane %v333, 4
        %v335 = vadd.f32 %v333, %v334
        %v336 = vrot.slane %v335, 2
        %v337 = vadd.f32 %v335, %v336
        %v338 = vrot.slane %v337, 1
        %v339 = vadd.f32 %v337, %v338
        %v340 = vmax.f32 %v330, 1e-12
        %v341 = vmax.f32 %v339, 1e-12
        %v342 = vrcp.pop %v340
        %v343 = vmul.f32 %v340, %v342
        %v344 = vsub.f32 1.0, %v343
        %v345 = vmul.f32 %v342, %v344
        %v346 = vadd.f32 %v342, %v345
        %vm347 = vweird.f32 %v340
        %vm348 = vweird.f32 %v342
        %vm349 = vmor %vm347, %vm348
        %v350 = vsel %vm349, %v342, %v346
        %v351 = vand.u32 2147483647, %v340
        %vm352 = vcmp.eq.f32.partialorder %v351, 8.507059e+37
        %v353 = vand.u32 %v340, 2147483648
        %v354 = vor.u32 1.1754944e-38, %v353
        %v355 = vsel %vm352, %v354, %v350
        %v356 = vmul.f32 %v234, %v355
        %v357 = vrcp.pop %v341
        %v358 = vmul.f32 %v341, %v357
        %v359 = vsub.f32 1.0, %v358
        %v360 = vmul.f32 %v357, %v359
        %v361 = vadd.f32 %v357, %v360
        %vm362 = vweird.f32 %v341
        %vm363 = vweird.f32 %v357
        %vm364 = vmor %vm362, %vm363
        %v365 = vsel %vm364, %v357, %v361
        %v366 = vand.u32 2147483647, %v341
        %vm367 = vcmp.eq.f32.partialorder %v366, 8.507059e+37
        %v368 = vand.u32 %v341, 2147483648
        %v369 = vor.u32 1.1754944e-38, %v368
        %v370 = vsel %vm367, %v369, %v365
        %v371 = vmul.f32 %v235, %v370
        %v372 = vmul.f32 %v236, %v355
        %v373 = vmul.f32 %v237, %v370
        %v374 = vmul.f32 %v238, %v355
        %v375 = vmul.f32 %v239, %v370
        %v376 = vmul.f32 %v240, %v355
        %v377 = vmul.f32 %v241, %v370
        %s378 = smul.u32 %s27, 256
        %s379 = sshra.s32 %s378, 7
        %s380 = sand.u32 %s378, 127
        %s381 = smul.addr %s379, 8
        %s382 = scalar_lea.vmem %s197, %s381 [#allocation5]
        %v383 = vld [vmem:[%s382] sm:$0xff]
        %v384 = vld [vmem:[%s382 + $0x8] sm:$0xff]
        %v385 = vld [vmem:[%s382 + $0x10] sm:$0xff]
        %v386 = vld [vmem:[%s382 + $0x18] sm:$0xff]
        %v387 = vld [vmem:[%s382 + $0x20] sm:$0xff]
        %v388 = vld [vmem:[%s382 + $0x28] sm:$0xff]
        %v389 = vld [vmem:[%s382 + $0x30] sm:$0xff]
        %v390 = vld [vmem:[%s382 + $0x38] sm:$0xff]
        %v391 = vand.u32 2147483647, %v383
        %v392 = vand.u32 2147483647, %v384
        %v393 = vand.u32 2147483647, %v385
        %v394 = vand.u32 2147483647, %v386
        %v395 = vand.u32 2147483647, %v387
        %v396 = vand.u32 2147483647, %v388
        %v397 = vand.u32 2147483647, %v389
        %v398 = vand.u32 2147483647, %v390
        %v399 = vadd.f32 %v391, %v393
        %v400 = vadd.f32 %v399, %v395
        %v401 = vadd.f32 %v400, %v397
        %v402 = vrot.slane %v401, 4
        %v403 = vadd.f32 %v401, %v402
        %v404 = vrot.slane %v403, 2
        %v405 = vadd.f32 %v403, %v404
        %v406 = vrot.slane %v405, 1
        %v407 = vadd.f32 %v405, %v406
        %v408 = vadd.f32 %v392, %v394
        %v409 = vadd.f32 %v408, %v396
        %v410 = vadd.f32 %v409, %v398
        %v411 = vrot.slane %v410, 4
        %v412 = vadd.f32 %v410, %v411
        %v413 = vrot.slane %v412, 2
        %v414 = vadd.f32 %v412, %v413
        %v415 = vrot.slane %v414, 1
        %v416 = vadd.f32 %v414, %v415
        %v417 = vmax.f32 %v407, 1e-12
        %v418 = vmax.f32 %v416, 1e-12
        %v419 = vrcp.pop %v417
        %v420 = vmul.f32 %v417, %v419
        %v421 = vsub.f32 1.0, %v420
        %v422 = vmul.f32 %v419, %v421
        %v423 = vadd.f32 %v419, %v422
        %vm424 = vweird.f32 %v417
        %vm425 = vweird.f32 %v419
        %vm426 = vmor %vm424, %vm425
        %v427 = vsel %vm426, %v419, %v423
        %v428 = vand.u32 2147483647, %v417
        %vm429 = vcmp.eq.f32.partialorder %v428, 8.507059e+37
        %v430 = vand.u32 %v417, 2147483648
        %v431 = vor.u32 1.1754944e-38, %v430
        %v432 = vsel %vm429, %v431, %v427
        %v433 = vmul.f32 %v383, %v432
        %v434 = vrcp.pop %v418
        %v435 = vmul.f32 %v418, %v434
        %v436 = vsub.f32 1.0, %v435
        %v437 = vmul.f32 %v434, %v436
        %v438 = vadd.f32 %v434, %v437
        %vm439 = vweird.f32 %v418
        %vm440 = vweird.f32 %v434
        %vm441 = vmor %vm439, %vm440
        %v442 = vsel %vm441, %v434, %v438
        %v443 = vand.u32 2147483647, %v418
        %vm444 = vcmp.eq.f32.partialorder %v443, 8.507059e+37
        %v445 = vand.u32 %v418, 2147483648
        %v446 = vor.u32 1.1754944e-38, %v445
        %v447 = vsel %vm444, %v446, %v442
        %v448 = vmul.f32 %v384, %v447
        %v449 = vmul.f32 %v385, %v432
        %v450 = vmul.f32 %v386, %v447
        %v451 = vmul.f32 %v387, %v432
        %v452 = vmul.f32 %v388, %v447
        %v453 = vmul.f32 %v389, %v432
        %v454 = vmul.f32 %v390, %v447
        %v455 = vmul.f32 %v306, %v433
        %v456 = vmul.f32 %v307, %v448
        %v457 = vmul.f32 %v308, %v449
        %v458 = vmul.f32 %v309, %v450
        %v459 = vmul.f32 %v310, %v451
        %v460 = vmul.f32 %v311, %v452
        %v461 = vmul.f32 %v312, %v453
        %v462 = vmul.f32 %v313, %v454
        %v463 = vadd.f32 %v455, %v457
        %v464 = vadd.f32 %v463, %v459
        %v465 = vadd.f32 %v464, %v461
        %v466 = vrot.slane %v465, 4
        %v467 = vadd.f32 %v465, %v466
        %v468 = vrot.slane %v467, 2
        %v469 = vadd.f32 %v467, %v468
        %v470 = vrot.slane %v469, 1
        %v471 = vadd.f32 %v469, %v470
        %v472 = vadd.f32 %v456, %v458
        %v473 = vadd.f32 %v472, %v460
        %v474 = vadd.f32 %v473, %v462
        %v475 = vrot.slane %v474, 4
        %v476 = vadd.f32 %v474, %v475
        %v477 = vrot.slane %v476, 2
        %v478 = vadd.f32 %v476, %v477
        %v479 = vrot.slane %v478, 1
        %v480 = vadd.f32 %v478, %v479
        %v481 = vpack.c.bf16 %v372, %v356
        %v482 = vpack.c.bf16 %v373, %v371
        %v483 = vpack.c.bf16 %v376, %v374
        %v484 = vpack.c.bf16 %v377, %v375
        %v485 = vpack.c.bf16 %v308, %v306
        %v486 = vpack.c.bf16 %v309, %v307
        %v487 = vpack.c.bf16 %v312, %v310
        %v488 = vpack.c.bf16 %v313, %v311
        %489 = vxpose.binary.xlu0.c.b16.start [1/16] %v482, %v481, 128
        %490 = vxpose.binary.xlu0.c.b16.cont [2/16] %v484, %v483, 128
        %491 = vxpose.binary.xlu0.c.b16.cont [3/16] 0, 0, 128
        %492 = vxpose.binary.xlu0.c.b16.cont [4/16] 0, 0, 128
        %493 = vxpose.binary.xlu0.c.b16.cont [5/16] 0, 0, 128
        %494 = vxpose.binary.xlu0.c.b16.cont [6/16] 0, 0, 128
        %495 = vxpose.binary.xlu0.c.b16.cont [7/16] 0, 0, 128
        %496 = vxpose.binary.xlu0.c.b16.end [8/16] 0, 0, 128
        %v497 = vpop.trf.xlu0
        %v498 = vpop.trf.xlu0
        %v499 = vpop.trf.xlu0
        %v500 = vpop.trf.xlu0
        %v501 = vpop.trf.xlu0
        %v502 = vpop.trf.xlu0
        %v503 = vpop.trf.xlu0
        %v504 = vpop.trf.xlu0
        %v505 = vpop.trf.xlu0
        %v506 = vpop.trf.xlu0
        %v507 = vpop.trf.xlu0
        %v508 = vpop.trf.xlu0
        %v509 = vpop.trf.xlu0
        %v510 = vpop.trf.xlu0
        %v511 = vpop.trf.xlu0
        %v512 = vpop.trf.xlu0
        %vm513 = vcmask 261120
        %v515 = vsel %vm513, %v497, 0
        %v518 = vsel %vm513, %v499, 0
        %v521 = vsel %vm513, %v501, 0
        %v524 = vsel %vm513, %v503, 0
        %v527 = vsel %vm513, %v505, 0
        %v530 = vsel %vm513, %v507, 0
        %v533 = vsel %vm513, %v509, 0
        %v536 = vsel %vm513, %v511, 0
        %v539 = vsel %vm513, %v498, 0
        %v542 = vsel %vm513, %v500, 0
        %v545 = vsel %vm513, %v502, 0
        %v548 = vsel %vm513, %v504, 0
        %v551 = vsel %vm513, %v506, 0
        %v554 = vsel %vm513, %v508, 0
        %v557 = vsel %vm513, %v510, 0
        %v560 = vsel %vm513, %v512, 0
        %562 = vmatpush.bf16.msra.mxu0 0
        %563 = vmatpush.bf16.msra.mxu0 0
        %564 = vmatpush.bf16.msra.mxu0 0
        %565 = vmatpush.bf16.msra.mxu0 0
        %566 = vmatpush.bf16.msra.mxu0 0
        %567 = vmatpush.bf16.msra.mxu0 0
        %568 = vmatpush.bf16.msra.mxu0 %v487
        %569 = vmatpush.bf16.msra.mxu0 %v485
        %570 = vmatmul.bf16.gmra.mxu0 %v515
        %v571 = vpop.f32.mrf.mxu0
        %v572 = vadd.f32 0.0, %v571
        %v573 = vpop.f32.mrf.mxu0
        %v574 = vadd.f32 0.0, %v573
        %575 = vmatmul.bf16.gmra.mxu0 %v518
        %v576 = vpop.f32.mrf.mxu0
        %v577 = vadd.f32 0.0, %v576
        %v578 = vpop.f32.mrf.mxu0
        %v579 = vadd.f32 0.0, %v578
        %580 = vmatmul.bf16.gmra.mxu0 %v521
        %v581 = vpop.f32.mrf.mxu0
        %v582 = vadd.f32 0.0, %v581
        %v583 = vpop.f32.mrf.mxu0
        %v584 = vadd.f32 0.0, %v583
        %585 = vmatmul.bf16.gmra.mxu0 %v524
        %v586 = vpop.f32.mrf.mxu0
        %v587 = vadd.f32 0.0, %v586
        %v588 = vpop.f32.mrf.mxu0
        %v589 = vadd.f32 0.0, %v588
        %590 = vmatmul.bf16.gmra.mxu0 %v527
        %v591 = vpop.f32.mrf.mxu0
        %v592 = vadd.f32 0.0, %v591
        %v593 = vpop.f32.mrf.mxu0
        %v594 = vadd.f32 0.0, %v593
        %595 = vmatmul.bf16.gmra.mxu0 %v530
        %v596 = vpop.f32.mrf.mxu0
        %v597 = vadd.f32 0.0, %v596
        %v598 = vpop.f32.mrf.mxu0
        %v599 = vadd.f32 0.0, %v598
        %600 = vmatmul.bf16.gmra.mxu0 %v533
        %v601 = vpop.f32.mrf.mxu0
        %v602 = vadd.f32 0.0, %v601
        %v603 = vpop.f32.mrf.mxu0
        %v604 = vadd.f32 0.0, %v603
        %605 = vmatmul.bf16.gmra.mxu0 %v536
        %v606 = vpop.f32.mrf.mxu0
        %v607 = vadd.f32 0.0, %v606
        %v608 = vpop.f32.mrf.mxu0
        %v609 = vadd.f32 0.0, %v608
        %610 = vmatmul.bf16.gmra.mxu0 %v539
        %v611 = vpop.f32.mrf.mxu0
        %v612 = vadd.f32 0.0, %v611
        %v613 = vpop.f32.mrf.mxu0
        %v614 = vadd.f32 0.0, %v613
        %615 = vmatmul.bf16.gmra.mxu0 %v542
        %v616 = vpop.f32.mrf.mxu0
        %v617 = vadd.f32 0.0, %v616
        %v618 = vpop.f32.mrf.mxu0
        %v619 = vadd.f32 0.0, %v618
        %620 = vmatmul.bf16.gmra.mxu0 %v545
        %v621 = vpop.f32.mrf.mxu0
        %v622 = vadd.f32 0.0, %v621
        %v623 = vpop.f32.mrf.mxu0
        %v624 = vadd.f32 0.0, %v623
        %625 = vmatmul.bf16.gmra.mxu0 %v548
        %v626 = vpop.f32.mrf.mxu0
        %v627 = vadd.f32 0.0, %v626
        %v628 = vpop.f32.mrf.mxu0
        %v629 = vadd.f32 0.0, %v628
        %630 = vmatmul.bf16.gmra.mxu0 %v551
        %v631 = vpop.f32.mrf.mxu0
        %v632 = vadd.f32 0.0, %v631
        %v633 = vpop.f32.mrf.mxu0
        %v634 = vadd.f32 0.0, %v633
        %635 = vmatmul.bf16.gmra.mxu0 %v554
        %v636 = vpop.f32.mrf.mxu0
        %v637 = vadd.f32 0.0, %v636
        %v638 = vpop.f32.mrf.mxu0
        %v639 = vadd.f32 0.0, %v638
        %640 = vmatmul.bf16.gmra.mxu0 %v557
        %v641 = vpop.f32.mrf.mxu0
        %v642 = vadd.f32 0.0, %v641
        %v643 = vpop.f32.mrf.mxu0
        %v644 = vadd.f32 0.0, %v643
        %645 = vmatmul.bf16.gmra.mxu0 %v560
        %v646 = vpop.f32.mrf.mxu0
        %v647 = vadd.f32 0.0, %v646
        %v648 = vpop.f32.mrf.mxu0
        %v649 = vadd.f32 0.0, %v648
        %650 = vdwg.mxu0
        %651 = vmatpush.bf16.msra.mxu0 0
        %652 = vmatpush.bf16.msra.mxu0 0
        %653 = vmatpush.bf16.msra.mxu0 0
        %654 = vmatpush.bf16.msra.mxu0 0
        %655 = vmatpush.bf16.msra.mxu0 0
        %656 = vmatpush.bf16.msra.mxu0 0
        %657 = vmatpush.bf16.msra.mxu0 %v488
        %658 = vmatpush.bf16.msra.mxu0 %v486
        %659 = vmatmul.bf16.gmra.mxu0 %v515
        %v660 = vpop.f32.mrf.mxu0
        %v661 = vadd.f32 0.0, %v660
        %v662 = vpop.f32.mrf.mxu0
        %v663 = vadd.f32 0.0, %v662
        %664 = vmatmul.bf16.gmra.mxu0 %v518
        %v665 = vpop.f32.mrf.mxu0
        %v666 = vadd.f32 0.0, %v665
        %v667 = vpop.f32.mrf.mxu0
        %v668 = vadd.f32 0.0, %v667
        %669 = vmatmul.bf16.gmra.mxu0 %v521
        %v670 = vpop.f32.mrf.mxu0
        %v671 = vadd.f32 0.0, %v670
        %v672 = vpop.f32.mrf.mxu0
        %v673 = vadd.f32 0.0, %v672
        %674 = vmatmul.bf16.gmra.mxu0 %v524
        %v675 = vpop.f32.mrf.mxu0
        %v676 = vadd.f32 0.0, %v675
        %v677 = vpop.f32.mrf.mxu0
        %v678 = vadd.f32 0.0, %v677
        %679 = vmatmul.bf16.gmra.mxu0 %v527
        %v680 = vpop.f32.mrf.mxu0
        %v681 = vadd.f32 0.0, %v680
        %v682 = vpop.f32.mrf.mxu0
        %v683 = vadd.f32 0.0, %v682
        %684 = vmatmul.bf16.gmra.mxu0 %v530
        %v685 = vpop.f32.mrf.mxu0
        %v686 = vadd.f32 0.0, %v685
        %v687 = vpop.f32.mrf.mxu0
        %v688 = vadd.f32 0.0, %v687
        %689 = vmatmul.bf16.gmra.mxu0 %v533
        %v690 = vpop.f32.mrf.mxu0
        %v691 = vadd.f32 0.0, %v690
        %v692 = vpop.f32.mrf.mxu0
        %v693 = vadd.f32 0.0, %v692
        %694 = vmatmul.bf16.gmra.mxu0 %v536
        %v695 = vpop.f32.mrf.mxu0
        %v696 = vadd.f32 0.0, %v695
        %v697 = vpop.f32.mrf.mxu0
        %v698 = vadd.f32 0.0, %v697
        %699 = vmatmul.bf16.gmra.mxu0 %v539
        %v700 = vpop.f32.mrf.mxu0
        %v701 = vadd.f32 0.0, %v700
        %v702 = vpop.f32.mrf.mxu0
        %v703 = vadd.f32 0.0, %v702
        %704 = vmatmul.bf16.gmra.mxu0 %v542
        %v705 = vpop.f32.mrf.mxu0
        %v706 = vadd.f32 0.0, %v705
        %v707 = vpop.f32.mrf.mxu0
        %v708 = vadd.f32 0.0, %v707
        %709 = vmatmul.bf16.gmra.mxu0 %v545
        %v710 = vpop.f32.mrf.mxu0
        %v711 = vadd.f32 0.0, %v710
        %v712 = vpop.f32.mrf.mxu0
        %v713 = vadd.f32 0.0, %v712
        %714 = vmatmul.bf16.gmra.mxu0 %v548
        %v715 = vpop.f32.mrf.mxu0
        %v716 = vadd.f32 0.0, %v715
        %v717 = vpop.f32.mrf.mxu0
        %v718 = vadd.f32 0.0, %v717
        %719 = vmatmul.bf16.gmra.mxu0 %v551
        %v720 = vpop.f32.mrf.mxu0
        %v721 = vadd.f32 0.0, %v720
        %v722 = vpop.f32.mrf.mxu0
        %v723 = vadd.f32 0.0, %v722
        %724 = vmatmul.bf16.gmra.mxu0 %v554
        %v725 = vpop.f32.mrf.mxu0
        %v726 = vadd.f32 0.0, %v725
        %v727 = vpop.f32.mrf.mxu0
        %v728 = vadd.f32 0.0, %v727
        %729 = vmatmul.bf16.gmra.mxu0 %v557
        %v730 = vpop.f32.mrf.mxu0
        %v731 = vadd.f32 0.0, %v730
        %v732 = vpop.f32.mrf.mxu0
        %v733 = vadd.f32 0.0, %v732
        %734 = vmatmul.bf16.gmra.mxu0 %v560
        %v735 = vpop.f32.mrf.mxu0
        %v736 = vadd.f32 0.0, %v735
        %v737 = vpop.f32.mrf.mxu0
        %v738 = vadd.f32 0.0, %v737
        %739 = vdwg.mxu0
        %v740 = vmul.f32 %v572, 1.442695
        %v741 = vpow.pop %v740
        %v742 = vmul.f32 %v661, 1.442695
        %v743 = vpow.pop %v742
        %v744 = vmul.f32 %v574, 1.442695
        %v745 = vpow.pop %v744
        %v746 = vmul.f32 %v663, 1.442695
        %v747 = vpow.pop %v746
        %v748 = vmul.f32 %v577, 1.442695
        %v749 = vpow.pop %v748
        %v750 = vmul.f32 %v666, 1.442695
        %v751 = vpow.pop %v750
        %v752 = vmul.f32 %v579, 1.442695
        %v753 = vpow.pop %v752
        %v754 = vmul.f32 %v668, 1.442695
        %v755 = vpow.pop %v754
        %v756 = vmul.f32 %v582, 1.442695
        %v757 = vpow.pop %v756
        %v758 = vmul.f32 %v671, 1.442695
        %v759 = vpow.pop %v758
        %v760 = vmul.f32 %v584, 1.442695
        %v761 = vpow.pop %v760
        %v762 = vmul.f32 %v673, 1.442695
        %v763 = vpow.pop %v762
        %v764 = vmul.f32 %v587, 1.442695
        %v765 = vpow.pop %v764
        %v766 = vmul.f32 %v676, 1.442695
        %v767 = vpow.pop %v766
        %v768 = vmul.f32 %v589, 1.442695
        %v769 = vpow.pop %v768
        %v770 = vmul.f32 %v678, 1.442695
        %v771 = vpow.pop %v770
        %v772 = vmul.f32 %v592, 1.442695
        %v773 = vpow.pop %v772
        %v774 = vmul.f32 %v681, 1.442695
        %v775 = vpow.pop %v774
        %v776 = vmul.f32 %v594, 1.442695
        %v777 = vpow.pop %v776
        %v778 = vmul.f32 %v683, 1.442695
        %v779 = vpow.pop %v778
        %v780 = vmul.f32 %v597, 1.442695
        %v781 = vpow.pop %v780
        %v782 = vmul.f32 %v686, 1.442695
        %v783 = vpow.pop %v782
        %v784 = vmul.f32 %v599, 1.442695
        %v785 = vpow.pop %v784
        %v786 = vmul.f32 %v688, 1.442695
        %v787 = vpow.pop %v786
        %v788 = vmul.f32 %v602, 1.442695
        %v789 = vpow.pop %v788
        %v790 = vmul.f32 %v691, 1.442695
        %v791 = vpow.pop %v790
        %v792 = vmul.f32 %v604, 1.442695
        %v793 = vpow.pop %v792
        %v794 = vmul.f32 %v693, 1.442695
        %v795 = vpow.pop %v794
        %v796 = vmul.f32 %v607, 1.442695
        %v797 = vpow.pop %v796
        %v798 = vmul.f32 %v696, 1.442695
        %v799 = vpow.pop %v798
        %v800 = vmul.f32 %v609, 1.442695
        %v801 = vpow.pop %v800
        %v802 = vmul.f32 %v698, 1.442695
        %v803 = vpow.pop %v802
        %v804 = vmul.f32 %v612, 1.442695
        %v805 = vpow.pop %v804
        %v806 = vmul.f32 %v701, 1.442695
        %v807 = vpow.pop %v806
        %v808 = vmul.f32 %v614, 1.442695
        %v809 = vpow.pop %v808
        %v810 = vmul.f32 %v703, 1.442695
        %v811 = vpow.pop %v810
        %v812 = vmul.f32 %v617, 1.442695
        %v813 = vpow.pop %v812
        %v814 = vmul.f32 %v706, 1.442695
        %v815 = vpow.pop %v814
        %v816 = vmul.f32 %v619, 1.442695
        %v817 = vpow.pop %v816
        %v818 = vmul.f32 %v708, 1.442695
        %v819 = vpow.pop %v818
        %v820 = vmul.f32 %v622, 1.442695
        %v821 = vpow.pop %v820
        %v822 = vmul.f32 %v711, 1.442695
        %v823 = vpow.pop %v822
        %v824 = vmul.f32 %v624, 1.442695
        %v825 = vpow.pop %v824
        %v826 = vmul.f32 %v713, 1.442695
        %v827 = vpow.pop %v826
        %v828 = vmul.f32 %v627, 1.442695
        %v829 = vpow.pop %v828
        %v830 = vmul.f32 %v716, 1.442695
        %v831 = vpow.pop %v830
        %v832 = vmul.f32 %v629, 1.442695
        %v833 = vpow.pop %v832
        %v834 = vmul.f32 %v718, 1.442695
        %v835 = vpow.pop %v834
        %v836 = vmul.f32 %v632, 1.442695
        %v837 = vpow.pop %v836
        %v838 = vmul.f32 %v721, 1.442695
        %v839 = vpow.pop %v838
        %v840 = vmul.f32 %v634, 1.442695
        %v841 = vpow.pop %v840
        %v842 = vmul.f32 %v723, 1.442695
        %v843 = vpow.pop %v842
        %v844 = vmul.f32 %v637, 1.442695
        %v845 = vpow.pop %v844
        %v846 = vmul.f32 %v726, 1.442695
        %v847 = vpow.pop %v846
        %v848 = vmul.f32 %v639, 1.442695
        %v849 = vpow.pop %v848
        %v850 = vmul.f32 %v728, 1.442695
        %v851 = vpow.pop %v850
        %v852 = vmul.f32 %v642, 1.442695
        %v853 = vpow.pop %v852
        %v854 = vmul.f32 %v731, 1.442695
        %v855 = vpow.pop %v854
        %v856 = vmul.f32 %v644, 1.442695
        %v857 = vpow.pop %v856
        %v858 = vmul.f32 %v733, 1.442695
        %v859 = vpow.pop %v858
        %v860 = vmul.f32 %v647, 1.442695
        %v861 = vpow.pop %v860
        %v862 = vmul.f32 %v736, 1.442695
        %v863 = vpow.pop %v862
        %v864 = vmul.f32 %v649, 1.442695
        %v865 = vpow.pop %v864
        %v866 = vmul.f32 %v738, 1.442695
        %v867 = vpow.pop %v866
        %v868 = vadd.f32 %v741, %v745
        %v869 = vadd.f32 %v868, %v749
        %v870 = vadd.f32 %v869, %v753
        %v871 = vadd.f32 %v870, %v757
        %v872 = vadd.f32 %v871, %v761
        %v873 = vadd.f32 %v872, %v765
        %v874 = vadd.f32 %v873, %v769
        %v875 = vadd.f32 %v874, %v773
        %v876 = vadd.f32 %v875, %v777
        %v877 = vadd.f32 %v876, %v781
        %v878 = vadd.f32 %v877, %v785
        %v879 = vadd.f32 %v878, %v789
        %v880 = vadd.f32 %v879, %v793
        %v881 = vadd.f32 %v880, %v797
        %v882 = vadd.f32 %v881, %v801
        %v883 = vadd.f32 %v882, %v805
        %v884 = vadd.f32 %v883, %v809
        %v885 = vadd.f32 %v884, %v813
        %v886 = vadd.f32 %v885, %v817
        %v887 = vadd.f32 %v886, %v821
        %v888 = vadd.f32 %v887, %v825
        %v889 = vadd.f32 %v888, %v829
        %v890 = vadd.f32 %v889, %v833
        %v891 = vadd.f32 %v890, %v837
        %v892 = vadd.f32 %v891, %v841
        %v893 = vadd.f32 %v892, %v845
        %v894 = vadd.f32 %v893, %v849
        %v895 = vadd.f32 %v894, %v853
        %v896 = vadd.f32 %v895, %v857
        %v897 = vadd.f32 %v896, %v861
        %v898 = vadd.f32 %v897, %v865
        %v899 = vrot.slane %v898, 4
        %v900 = vadd.f32 %v898, %v899
        %v901 = vrot.slane %v900, 2
        %v902 = vadd.f32 %v900, %v901
        %v903 = vrot.slane %v902, 1
        %v904 = vadd.f32 %v902, %v903
        %v905 = vadd.f32 %v743, %v747
        %v906 = vadd.f32 %v905, %v751
        %v907 = vadd.f32 %v906, %v755
        %v908 = vadd.f32 %v907, %v759
        %v909 = vadd.f32 %v908, %v763
        %v910 = vadd.f32 %v909, %v767
        %v911 = vadd.f32 %v910, %v771
        %v912 = vadd.f32 %v911, %v775
        %v913 = vadd.f32 %v912, %v779
        %v914 = vadd.f32 %v913, %v783
        %v915 = vadd.f32 %v914, %v787
        %v916 = vadd.f32 %v915, %v791
        %v917 = vadd.f32 %v916, %v795
        %v918 = vadd.f32 %v917, %v799
        %v919 = vadd.f32 %v918, %v803
        %v920 = vadd.f32 %v919, %v807
        %v921 = vadd.f32 %v920, %v811
        %v922 = vadd.f32 %v921, %v815
        %v923 = vadd.f32 %v922, %v819
        %v924 = vadd.f32 %v923, %v823
        %v925 = vadd.f32 %v924, %v827
        %v926 = vadd.f32 %v925, %v831
        %v927 = vadd.f32 %v926, %v835
        %v928 = vadd.f32 %v927, %v839
        %v929 = vadd.f32 %v928, %v843
        %v930 = vadd.f32 %v929, %v847
        %v931 = vadd.f32 %v930, %v851
        %v932 = vadd.f32 %v931, %v855
        %v933 = vadd.f32 %v932, %v859
        %v934 = vadd.f32 %v933, %v863
        %v935 = vadd.f32 %v934, %v867
        %v936 = vrot.slane %v935, 4
        %v937 = vadd.f32 %v935, %v936
        %v938 = vrot.slane %v937, 2
        %v939 = vadd.f32 %v937, %v938
        %v940 = vrot.slane %v939, 1
        %v941 = vadd.f32 %v939, %v940
        %v942 = vlog2.pop %v904
        %v943 = vmul.f32 %v942, 0.6931472
        %v944 = vlog2.pop %v941
        %v945 = vmul.f32 %v944, 0.6931472
        %v946 = vsub.f32 %v943, %v471
        %v947 = vsub.f32 %v945, %v480
        %v950 = vrot.slane %v947, 7
        %vm951 = vcmask 1040384
        %v952 = vsel %vm951, %v946, %v950
        %v954 = vlaneseq
        %vm955 = vcmp.ge.s32.totalorder %v954, 0
        %vm956 = vcmp.lt.s32.totalorder %v954, 256
        %vm957 = vmand %vm955, %vm956
        %958 = vst.msk [vmem:[%s223] sm:$0x3] %vm957, %v952
        %s959 = sand.u32 %s98, 1
        %s960 = scalar_lea.sflag [#allocation4], %s959
        %s961 = sand.u32 %s98, 1
        %s962 = smul.addr %s961, 2
        %s963 = scalar_lea.vmem [#allocation7], %s962
        // Predicated region
        $region37: #{tpu_custom_call.1} parent=27 // pred_check
          %p964 = pneg %p108
        $region38: #{tpu_custom_call.1} parent=27 // pred_check_branch
          %966 = sbr.rel (%p964) target = $region40
        $region39: #{tpu_custom_call.1} parent=27 // pred_region
          %968 = vsyncadd %s960, 0
          %s969 = smul.addr %s27, 2
          %s970 = smul.addr %s26, 2
          %s971 = sadd.s32 %s969, %s970
          %s972 = scalar_lea.hbm %s2, %s971
          %s974 = sshll.u32 %s963, 4
          %s975 = int_to_ptr.vmem [resolvable:$true] %s974
          %s976 = sshll.u32 %s972, 4
          %s977 = int_to_ptr.hbm [resolvable:$true] %s976
          %979 = dma.vmem_to_hbm [thread:$0]  %s975, 32, %s977, %s960
        $region40: #{tpu_custom_call.1} parent=27 // pred_fallthru
          _
      $region28: #{tpu_custom_call.1} parent=5 // pred_fallthru
        _
      %p980 = scmp.le.s32.totalorder 2, %s17
      // Predicated region
      $region41: #{tpu_custom_call.1} parent=5 // pred_check
        %p981 = pneg %p980
      $region42: #{tpu_custom_call.1} parent=5 // pred_check_branch
        %983 = sbr.rel (%p981) target = $region44
      $region43: #{tpu_custom_call.1} parent=5 // pred_region
        %s984 = ssub.s32 %s17, 2
        // Predicated region
        $region45: #{tpu_custom_call.1} parent=43 // pred_check
          %p985 = pneg %p114
        $region46: #{tpu_custom_call.1} parent=43 // pred_check_branch
          %987 = sbr.rel (%p985) target = $region48
        $region47: #{tpu_custom_call.1} parent=43 // pred_region
          %s988 = sand.u32 %s99, 1
          %s989 = scalar_lea.sflag [#allocation4], %s988
          %s990 = sand.u32 %s99, 1
          %s991 = smul.addr %s990, 2
          %s992 = scalar_lea.vmem [#allocation7], %s991
          %994 = dma.done %s989, 32
        $region48: #{tpu_custom_call.1} parent=43 // pred_fallthru
          _
      $region44: #{tpu_custom_call.1} parent=5 // pred_fallthru
        _
    $region6: #{tpu_custom_call.1} parent=1 // loop_footer
      %s21 = sadd.s32 1, %s17
    $region7: #{tpu_custom_call.1} parent=1 // loop_footer_branch
      %16 = sbr.rel target = $region3
    $region8: #{tpu_custom_call.1} parent=1 // loop_exit
      _
    %995 = vsyncpa [#allocation3], 1
    %s996 = scalar_lea.sflag [#allocation3], 1
    %997 = vsyncpa %s996, 1
    %998 = vsyncpa [#allocation6], 1
    %s999 = scalar_lea.sflag [#allocation6], 1
    %1000 = vsyncpa %s999, 1
    %1001 = vsyncpa [#allocation4], 1
    %s1002 = scalar_lea.sflag [#allocation4], 1
    %1003 = vsyncpa %s1002, 1

</llo_original>
